<compile_context>
chip_gen: v7x
topology: tpu7x:2x2x1
jax: 0.10.0
libtpu: 0.0.40
codegen_flags: <defaults>
</compile_context>

<pallas_src>
import functools

import jax
import jax.numpy as jnp
from jax.experimental import pallas as pl
from jax.experimental.pallas import tpu as pltpu


def _cosine_partials_kernel(a_ref, b_ref, dot_out, a2_out, b2_out,
                            dot_acc, a2_acc, b2_acc, *,
                            d_actual, tile_d, kd, need_mask):
    """Accumulates per-row <a,b>, <a,a>, <b,b> over the D (lane) axis."""
    c = pl.program_id(0)          # core-split index ("parallel")
    j = pl.program_id(1)          # reduction step ("arbitrary")

    @pl.when(j == 0)
    def _():
        dot_acc[...] = jnp.zeros_like(dot_acc)
        a2_acc[...] = jnp.zeros_like(a2_acc)
        b2_acc[...] = jnp.zeros_like(b2_acc)

    a = a_ref[...].astype(jnp.float32)        # (N, TD), lane-dense
    b = b_ref[...].astype(jnp.float32)

    if need_mask:
        # Zero out columns past the real D (ragged last tile, or a logically
        # out-of-range tile of the 2-way core split that was clamped to the
        # last in-bounds block).  Masking happens before any arithmetic, so no
        # garbage propagates.
        t_log = c * kd + j
        col = t_log * tile_d + jax.lax.broadcasted_iota(jnp.int32, a.shape, 1)
        valid = col < d_actual
        a = jnp.where(valid, a, 0.0)
        b = jnp.where(valid, b, 0.0)

    dot_acc[...] += jnp.sum(a * b, axis=-1, keepdims=True)
    a2_acc[...] += jnp.sum(a * a, axis=-1, keepdims=True)
    b2_acc[...] += jnp.sum(b * b, axis=-1, keepdims=True)

    @pl.when(j == pl.num_programs(1) - 1)
    def _():
        dot_out[...] = dot_acc[...].reshape(dot_out.shape)
        a2_out[...] = a2_acc[...].reshape(a2_out.shape)
        b2_out[...] = b2_acc[...].reshape(b2_out.shape)


def _item_cosine_loss(a, b, *, eps, max_block_bytes):
    """mean_n(1 - cos(a[n].flatten(), b[n].flatten())) via one pallas_call."""
    assert a.shape == b.shape, (a.shape, b.shape)
    n = a.shape[0]
    d = 1
    for s in a.shape[1:]:
        d *= s
    a2 = a.reshape(n, d)      # contiguous dim merge: no transpose, no HBM pass
    b2 = b.reshape(n, d)

    itemsize = max(a2.dtype.itemsize, b2.dtype.itemsize)
    tile_d = max_block_bytes // max(1, n * itemsize)
    tile_d = max(128, (tile_d // 128) * 128)
    if tile_d > d:
        tile_d = d                        # single full-extent block over D

    t_total = pl.cdiv(d, tile_d)          # logical tiles along D
    nc = 2 if t_total >= 2 else 1         # split reduction range across 2 TCs
    kd = pl.cdiv(t_total, nc)

    need_clamp = nc * kd > t_total        # core 1 may run past the last tile
    need_mask = nc * kd * tile_d > d      # ragged tail and/or clamped tiles

    if need_clamp:
        def in_map(c, j):
            return (0, jnp.minimum(c * kd + j, t_total - 1))
    else:
        def in_map(c, j):
            return (0, c * kd + j)

    kernel = functools.partial(
        _cosine_partials_kernel,
        d_actual=d, tile_d=tile_d, kd=kd, need_mask=need_mask)

    out_sds = jax.ShapeDtypeStruct((nc, n, 1), jnp.float32)
    out_spec = pl.BlockSpec((1, n, 1), lambda c, j: (c, 0, 0))

    dot_p, a2_p, b2_p = pl.pallas_call(
        kernel,
        out_shape=(out_sds, out_sds, out_sds),
        grid_spec=pltpu.PrefetchScalarGridSpec(
            num_scalar_prefetch=0,
            grid=(nc, kd),
            in_specs=[
                pl.BlockSpec((n, tile_d), in_map),     # a  (N, TD)
                pl.BlockSpec((n, tile_d), in_map),     # b  (N, TD)
            ],
            out_specs=(out_spec, out_spec, out_spec),
            scratch_shapes=[pltpu.VMEM((n, 1), jnp.float32)] * 3,
        ),
        compiler_params=pltpu.CompilerParams(
            dimension_semantics=("parallel", "arbitrary")),
    )(a2, b2)

    # Tiny cross-core combine + finalize (a few floats) in the wrapper.
    dot = jnp.sum(dot_p[:, :, 0], axis=0)          # (N,)
    na2 = jnp.sum(a2_p[:, :, 0], axis=0)
    nb2 = jnp.sum(b2_p[:, :, 0], axis=0)
    cos = dot / jnp.maximum(jnp.sqrt(na2 * nb2), eps)
    return jnp.mean(1.0 - cos)


def dinomaly_loss(a_list, b_list, *, p=0.9, factor=0.0, eps=1e-8,
                  max_block_bytes=2 * 1024 * 1024):
    """Forward pass of DinomalyLoss over lists of feature maps.

    p / factor only parameterize the backward gradient-masking hook and have
    no effect on the forward value.
    """
    assert len(a_list) == len(b_list) and len(a_list) > 0
    del p, factor  # backward-only (see TODO at top of file)
    loss = _item_cosine_loss(a_list[0], b_list[0],
                             eps=eps, max_block_bytes=max_block_bytes)
    for a, b in zip(a_list[1:], b_list[1:]):
        loss = loss + _item_cosine_loss(a, b, eps=eps,
                                        max_block_bytes=max_block_bytes)
    return loss / len(a_list)


def _dinomaly_loss_ref(a_list, b_list, eps=1e-8):
    """Pure-JAX reference mirroring the PyTorch forward."""
    total = 0.0
    for a, b in zip(a_list, b_list):
        af = a.reshape(a.shape[0], -1).astype(jnp.float32)
        bf = b.reshape(b.shape[0], -1).astype(jnp.float32)
        dot = jnp.sum(af * bf, axis=1)
        na = jnp.sqrt(jnp.sum(af * af, axis=1))
        nb = jnp.sqrt(jnp.sum(bf * bf, axis=1))
        cos = dot / jnp.maximum(na * nb, eps)
        total = total + jnp.mean(1.0 - cos)
    return total / len(a_list)


if __name__ == "__main__":
    key = jax.random.PRNGKey(0)
    ks = jax.random.split(key, 6)

    # Small feature "pyramid" (encoder vs decoder features), like Dinomaly.
    a_list = [
        jax.random.normal(ks[0], (2, 4, 16, 16), dtype=jnp.float32),
        jax.random.normal(ks[1], (2, 8, 8, 8), dtype=jnp.float32),
    ]
    b_list = [
        a_list[0] + 0.3 * jax.random.normal(ks[2], (2, 4, 16, 16), dtype=jnp.float32),
        a_list[1] + 0.3 * jax.random.normal(ks[3], (2, 8, 8, 8), dtype=jnp.float32),
    ]

    out = jax.block_until_ready(dinomaly_loss(a_list, b_list))
    ref = _dinomaly_loss_ref(a_list, b_list)
    assert jnp.allclose(out, ref, rtol=1e-4, atol=1e-4), (out, ref)

    # Exercise the tiled / two-core-split / masked-ragged-tail path by shrinking
    # the block budget (D = 65*32*32 = 66560 -> 9 tiles of 8192, split 2 ways).
    a_big = [jax.random.normal(ks[4], (2, 65, 32, 32), dtype=jnp.float32)]
    b_big = [a_big[0] + 0.3 * jax.random.normal(ks[5], (2, 65, 32, 32),
                                                dtype=jnp.float32)]
    out2 = jax.block_until_ready(
        dinomaly_loss(a_big, b_big, max_block_bytes=64 * 1024))
    ref2 = _dinomaly_loss_ref(a_big, b_big)
    assert jnp.allclose(out2, ref2, rtol=1e-4, atol=1e-4), (out2, ref2)

    print("KERNEL_OK")
</pallas_src>

<mosaic_0001>
module attributes {stable_mosaic.version = 11 : i64} {
  func.func @_cosine_partials_kernel(%arg0: i32, %arg1: i32, %arg2: memref<2x1024xf32, #tpu.memory_space<vmem>>, %arg3: memref<2x1024xf32, #tpu.memory_space<vmem>>, %arg4: memref<1x2x1xf32, #tpu.memory_space<vmem>>, %arg5: memref<1x2x1xf32, #tpu.memory_space<vmem>>, %arg6: memref<1x2x1xf32, #tpu.memory_space<vmem>>, %arg7: memref<2x1xf32, #tpu.memory_space<vmem>>, %arg8: memref<2x1xf32, #tpu.memory_space<vmem>>, %arg9: memref<2x1xf32, #tpu.memory_space<vmem>>) attributes {dimension_semantics = [#tpu.dimension_semantics<parallel>, #tpu.dimension_semantics<arbitrary>], iteration_bounds = array<i64: 1, 1>, scalar_prefetch = 0 : i64, scratch_operands = 3 : i64, tpu.core_type = #tpu.core_type<tc>, window_params = [{transform_indices = @transform_0, window_bounds = array<i64: 2, 1024>}, {transform_indices = @transform_1, window_bounds = array<i64: 2, 1024>}, {transform_indices = @transform_2, window_bounds = array<i64: 1, 2, 1>}, {transform_indices = @transform_3, window_bounds = array<i64: 1, 2, 1>}, {transform_indices = @transform_4, window_bounds = array<i64: 1, 2, 1>}]} {
    %c0_i32 = arith.constant 0 : i32
    %0 = arith.cmpi eq, %arg1, %c0_i32 : i32
    %1 = arith.extui %0 : i1 to i32
    %c0_i32_0 = arith.constant 0 : i32
    %2 = arith.cmpi ne, %1, %c0_i32_0 : i32
    scf.if %2 {
      %cst_20 = arith.constant 0.000000e+00 : f32
      %26 = vector.broadcast %cst_20 : f32 to vector<2x1xf32>
      %c0_21 = arith.constant 0 : index
      %c0_22 = arith.constant 0 : index
      %27 = vector.load %arg7[%c0_21, %c0_22] : memref<2x1xf32, #tpu.memory_space<vmem>>, vector<2x1xf32>
      tpu.vector_store %arg7[%c0_21, %c0_22], %26 {strides = array<i32>} : memref<2x1xf32, #tpu.memory_space<vmem>>, vector<2x1xf32>,
      %cst_23 = arith.constant 0.000000e+00 : f32
      %28 = vector.broadcast %cst_23 : f32 to vector<2x1xf32>
      %c0_24 = arith.constant 0 : index
      %c0_25 = arith.constant 0 : index
      %29 = vector.load %arg8[%c0_24, %c0_25] : memref<2x1xf32, #tpu.memory_space<vmem>>, vector<2x1xf32>
      tpu.vector_store %arg8[%c0_24, %c0_25], %28 {strides = array<i32>} : memref<2x1xf32, #tpu.memory_space<vmem>>, vector<2x1xf32>,
      %cst_26 = arith.constant 0.000000e+00 : f32
      %30 = vector.broadcast %cst_26 : f32 to vector<2x1xf32>
      %c0_27 = arith.constant 0 : index
      %c0_28 = arith.constant 0 : index
      %31 = vector.load %arg9[%c0_27, %c0_28] : memref<2x1xf32, #tpu.memory_space<vmem>>, vector<2x1xf32>
      tpu.vector_store %arg9[%c0_27, %c0_28], %30 {strides = array<i32>} : memref<2x1xf32, #tpu.memory_space<vmem>>, vector<2x1xf32>,
    } else {
    }
    %c0 = arith.constant 0 : index
    %c0_1 = arith.constant 0 : index
    %3 = vector.load %arg2[%c0, %c0_1] : memref<2x1024xf32, #tpu.memory_space<vmem>>, vector<2x1024xf32>
    %c0_2 = arith.constant 0 : index
    %c0_3 = arith.constant 0 : index
    %4 = vector.load %arg3[%c0_2, %c0_3] : memref<2x1024xf32, #tpu.memory_space<vmem>>, vector<2x1024xf32>
    %c0_4 = arith.constant 0 : index
    %c0_5 = arith.constant 0 : index
    %5 = vector.load %arg7[%c0_4, %c0_5] : memref<2x1xf32, #tpu.memory_space<vmem>>, vector<2x1xf32>
    %6 = arith.mulf %3, %4 : vector<2x1024xf32>
    %cst = arith.constant dense<0.000000e+00> : vector<2xf32>
    %7 = vector.multi_reduction <add>, %6, %cst [1] : vector<2x1024xf32> to vector<2xf32>
    %8 = vector.shape_cast %7 : vector<2xf32> to vector<2x1xf32>
    %9 = arith.addf %5, %8 : vector<2x1xf32>
    %c0_6 = arith.constant 0 : index
    %c0_7 = arith.constant 0 : index
    %10 = vector.load %arg7[%c0_6, %c0_7] : memref<2x1xf32, #tpu.memory_space<vmem>>, vector<2x1xf32>
    tpu.vector_store %arg7[%c0_6, %c0_7], %9 {strides = array<i32>} : memref<2x1xf32, #tpu.memory_space<vmem>>, vector<2x1xf32>,
    %c0_8 = arith.constant 0 : index
    %c0_9 = arith.constant 0 : index
    %11 = vector.load %arg8[%c0_8, %c0_9] : memref<2x1xf32, #tpu.memory_space<vmem>>, vector<2x1xf32>
    %12 = arith.mulf %3, %3 : vector<2x1024xf32>
    %cst_10 = arith.constant dense<0.000000e+00> : vector<2xf32>
    %13 = vector.multi_reduction <add>, %12, %cst_10 [1] : vector<2x1024xf32> to vector<2xf32>
    %14 = vector.shape_cast %13 : vector<2xf32> to vector<2x1xf32>
    %15 = arith.addf %11, %14 : vector<2x1xf32>
    %c0_11 = arith.constant 0 : index
    %c0_12 = arith.constant 0 : index
    %16 = vector.load %arg8[%c0_11, %c0_12] : memref<2x1xf32, #tpu.memory_space<vmem>>, vector<2x1xf32>
    tpu.vector_store %arg8[%c0_11, %c0_12], %15 {strides = array<i32>} : memref<2x1xf32, #tpu.memory_space<vmem>>, vector<2x1xf32>,
    %c0_13 = arith.constant 0 : index
    %c0_14 = arith.constant 0 : index
    %17 = vector.load %arg9[%c0_13, %c0_14] : memref<2x1xf32, #tpu.memory_space<vmem>>, vector<2x1xf32>
    %18 = arith.mulf %4, %4 : vector<2x1024xf32>
    %cst_15 = arith.constant dense<0.000000e+00> : vector<2xf32>
    %19 = vector.multi_reduction <add>, %18, %cst_15 [1] : vector<2x1024xf32> to vector<2xf32>
    %20 = vector.shape_cast %19 : vector<2xf32> to vector<2x1xf32>
    %21 = arith.addf %17, %20 : vector<2x1xf32>
    %c0_16 = arith.constant 0 : index
    %c0_17 = arith.constant 0 : index
    %22 = vector.load %arg9[%c0_16, %c0_17] : memref<2x1xf32, #tpu.memory_space<vmem>>, vector<2x1xf32>
    tpu.vector_store %arg9[%c0_16, %c0_17], %21 {strides = array<i32>} : memref<2x1xf32, #tpu.memory_space<vmem>>, vector<2x1xf32>,
    %c0_i32_18 = arith.constant 0 : i32
    %23 = arith.cmpi eq, %arg1, %c0_i32_18 : i32
    %24 = arith.extui %23 : i1 to i32
    %c0_i32_19 = arith.constant 0 : i32
    %25 = arith.cmpi ne, %24, %c0_i32_19 : i32
    scf.if %25 {
      %c0_20 = arith.constant 0 : index
      %c0_21 = arith.constant 0 : index
      %26 = vector.load %arg7[%c0_20, %c0_21] : memref<2x1xf32, #tpu.memory_space<vmem>>, vector<2x1xf32>
      %27 = vector.shape_cast %26 : vector<2x1xf32> to vector<1x2x1xf32>
      %c0_22 = arith.constant 0 : index
      %c0_23 = arith.constant 0 : index
      %c0_24 = arith.constant 0 : index
      %28 = vector.load %arg4[%c0_22, %c0_23, %c0_24] : memref<1x2x1xf32, #tpu.memory_space<vmem>>, vector<1x2x1xf32>
      tpu.vector_store %arg4[%c0_22, %c0_23, %c0_24], %27 {strides = array<i32>} : memref<1x2x1xf32, #tpu.memory_space<vmem>>, vector<1x2x1xf32>,
      %c0_25 = arith.constant 0 : index
      %c0_26 = arith.constant 0 : index
      %29 = vector.load %arg8[%c0_25, %c0_26] : memref<2x1xf32, #tpu.memory_space<vmem>>, vector<2x1xf32>
      %30 = vector.shape_cast %29 : vector<2x1xf32> to vector<1x2x1xf32>
      %c0_27 = arith.constant 0 : index
      %c0_28 = arith.constant 0 : index
      %c0_29 = arith.constant 0 : index
      %31 = vector.load %arg5[%c0_27, %c0_28, %c0_29] : memref<1x2x1xf32, #tpu.memory_space<vmem>>, vector<1x2x1xf32>
      tpu.vector_store %arg5[%c0_27, %c0_28, %c0_29], %30 {strides = array<i32>} : memref<1x2x1xf32, #tpu.memory_space<vmem>>, vector<1x2x1xf32>,
      %c0_30 = arith.constant 0 : index
      %c0_31 = arith.constant 0 : index
      %32 = vector.load %arg9[%c0_30, %c0_31] : memref<2x1xf32, #tpu.memory_space<vmem>>, vector<2x1xf32>
      %33 = vector.shape_cast %32 : vector<2x1xf32> to vector<1x2x1xf32>
      %c0_32 = arith.constant 0 : index
      %c0_33 = arith.constant 0 : index
      %c0_34 = arith.constant 0 : index
      %34 = vector.load %arg6[%c0_32, %c0_33, %c0_34] : memref<1x2x1xf32, #tpu.memory_space<vmem>>, vector<1x2x1xf32>
      tpu.vector_store %arg6[%c0_32, %c0_33, %c0_34], %33 {strides = array<i32>} : memref<1x2x1xf32, #tpu.memory_space<vmem>>, vector<1x2x1xf32>,
    } else {
    }
    return
  }
  func.func @transform_0(%arg0: i32, %arg1: i32) -> (i32, i32) {
    %c1_i32 = arith.constant 1 : i32
    %0 = arith.muli %arg0, %c1_i32 : i32
    %1 = arith.addi %0, %arg1 : i32
    %c0_i32 = arith.constant 0 : i32
    %c0_i32_0 = arith.constant 0 : i32
    return %c0_i32, %1 : i32, i32
  }
  func.func @transform_1(%arg0: i32, %arg1: i32) -> (i32, i32) {
    %c1_i32 = arith.constant 1 : i32
    %0 = arith.muli %arg0, %c1_i32 : i32
    %1 = arith.addi %0, %arg1 : i32
    %c0_i32 = arith.constant 0 : i32
    %c0_i32_0 = arith.constant 0 : i32
    return %c0_i32, %1 : i32, i32
  }
  func.func @transform_2(%arg0: i32, %arg1: i32) -> (i32, i32, i32) {
    %c0_i32 = arith.constant 0 : i32
    %c0_i32_0 = arith.constant 0 : i32
    %c0_i32_1 = arith.constant 0 : i32
    return %arg0, %c0_i32, %c0_i32_0 : i32, i32, i32
  }
  func.func @transform_3(%arg0: i32, %arg1: i32) -> (i32, i32, i32) {
    %c0_i32 = arith.constant 0 : i32
    %c0_i32_0 = arith.constant 0 : i32
    %c0_i32_1 = arith.constant 0 : i32
    return %arg0, %c0_i32, %c0_i32_0 : i32, i32, i32
  }
  func.func @transform_4(%arg0: i32, %arg1: i32) -> (i32, i32, i32) {
    %c0_i32 = arith.constant 0 : i32
    %c0_i32_0 = arith.constant 0 : i32
    %c0_i32_1 = arith.constant 0 : i32
    return %arg0, %c0_i32, %c0_i32_0 : i32, i32, i32
  }
}

</mosaic_0001>

<llo_original>
// kernel: tpu_custom_call.1
$region0: #{tpu_custom_call.1}
  #allocation0 [shape = 'u32[]', space=smem, size = 0x4, offset = 0x4, fixed_abs, tag = 'smem constant byte address 0x4 - core index']
  #allocation1 [shape = 'u32[144,128]{1,0:T(1,128)}', space=vmem, size = 0x12000, scoped, tag = 'internal scratch']
  #allocation2 [shape = 'f32[2,1]{1,0:T(2,128)}', space=vmem, size = 0x400, scoped, tag = 'scratch operand']
  #allocation3 [shape = 'f32[2,1]{1,0:T(2,128)}', space=vmem, size = 0x400, scoped, tag = 'scratch operand']
  #allocation4 [shape = 'f32[2,1]{1,0:T(2,128)}', space=vmem, size = 0x400, scoped, tag = 'scratch operand']
  %s0 = inlined_call_operand.hbm [shape: f32[2,1024], index: 0, kind: input, shape index: {}]
  %s1 = inlined_call_operand.hbm [shape: f32[2,1024], index: 1, kind: input, shape index: {}]
  %s2 = inlined_call_operand.vmem [shape: f32[1,2,1], index: 2, kind: output, shape index: {0}]
  %s3 = inlined_call_operand.vmem [shape: f32[1,2,1], index: 3, kind: output, shape index: {1}]
  %s4 = inlined_call_operand.vmem [shape: f32[1,2,1], index: 4, kind: output, shape index: {2}]
  %5 = xla_tuple %s2, %s3, %s4
  %s6 = sld [smem:[#allocation0]]
  $region50: #{tpu_custom_call.1} parent=0
    _
  %s8 = ssub.s32 1, %s6
  %s9 = scalar_select 0, %s8, %s6
  $region1: #{tpu_custom_call.1} parent=0
    #allocation5 [shape = 'u8[8192]{0}', space=vmem, size = 0x2000, scoped, tag = 'input window, operand 0, single buffered']
    #allocation6 [shape = 's32[1]{0}', space=sflag, size = 0x4, scoped, tag = 'scoped memory for tpu_custom_call.1']
    #allocation7 [shape = 'u8[8192]{0}', space=vmem, size = 0x2000, scoped, tag = 'input window, operand 1, single buffered']
    #allocation8 [shape = 's32[1]{0}', space=sflag, size = 0x4, scoped, tag = 'scoped memory for tpu_custom_call.1']
    %10 = vsyncpa [#allocation6], 0
    %11 = vsyncpa [#allocation8], 0
    // Predicated region
    $region2: #{tpu_custom_call.1} parent=1 // pred_check
      _
    $region3: #{tpu_custom_call.1} parent=1 // pred_check_branch
      %13 = sbr.rel (0) target = $region5
    $region4: #{tpu_custom_call.1} parent=1 // pred_region
      %s14 = sadd.s32 0, 0
      %s15 = smul.u32 8, %s14
      %s17 = ssub.s32 256, 256
      %18 = vsyncadd [#allocation6], %s17
      %s19 = smul.addr %s15, 32
      %s20 = scalar_lea.hbm %s0, %s19
      %s22 = sshll.u32 [#allocation5], 4
      %s23 = int_to_ptr.vmem [resolvable:$true] %s22
      %25 = dma.hbm_to_vmem [thread:$0]  %s20, 256, %s23, [#allocation6]
    $region5: #{tpu_custom_call.1} parent=1 // pred_fallthru
      _
    // Predicated region
    $region6: #{tpu_custom_call.1} parent=1 // pred_check
      _
    $region7: #{tpu_custom_call.1} parent=1 // pred_check_branch
      %27 = sbr.rel (0) target = $region9
    $region8: #{tpu_custom_call.1} parent=1 // pred_region
      %s28 = sadd.s32 0, 0
      %s29 = smul.u32 8, %s28
      %s31 = ssub.s32 256, 256
      %32 = vsyncadd [#allocation8], %s31
      %s33 = smul.addr %s29, 32
      %s34 = scalar_lea.hbm %s1, %s33
      %s36 = sshll.u32 [#allocation7], 4
      %s37 = int_to_ptr.vmem [resolvable:$true] %s36
      %39 = dma.hbm_to_vmem [thread:$0]  %s34, 256, %s37, [#allocation8]
    $region9: #{tpu_custom_call.1} parent=1 // pred_fallthru
      _
    // Predicated region
    $region10: #{tpu_custom_call.1} parent=1 // pred_check
      _
    $region11: #{tpu_custom_call.1} parent=1 // pred_check_branch
      %41 = sbr.rel (0) target = $region13
    $region12: #{tpu_custom_call.1} parent=1 // pred_region
      %42 = dma.done [#allocation6], 256
    $region13: #{tpu_custom_call.1} parent=1 // pred_fallthru
      _
    // Predicated region
    $region14: #{tpu_custom_call.1} parent=1 // pred_check
      _
    $region15: #{tpu_custom_call.1} parent=1 // pred_check_branch
      %44 = sbr.rel (0) target = $region17
    $region16: #{tpu_custom_call.1} parent=1 // pred_region
      %45 = dma.done [#allocation8], 256
    $region17: #{tpu_custom_call.1} parent=1 // pred_fallthru
      _
    %s46 = sadd.s32 0, 0
    %s47 = smul.u32 8, %s46
    %s48 = sadd.s32 0, 0
    %s49 = smul.u32 8, %s48
    %p50 = scmp.eq.s32.totalorder 0, 0
    // Predicated region
    $region18: #{tpu_custom_call.1} parent=1 // pred_check
      %p51 = pneg %p50
    $region19: #{tpu_custom_call.1} parent=1 // pred_check_branch
      %53 = sbr.rel (%p51) target = $region21
    $region20: #{tpu_custom_call.1} parent=1 // pred_region
      %vm54 = vcmask 1024
      %55 = vst.msk [vmem:[#allocation2] sm:$0x3] %vm54, 0.0
      %56 = vst.msk [vmem:[#allocation3] sm:$0x3] %vm54, 0.0
      %57 = vst.msk [vmem:[#allocation4] sm:$0x3] %vm54, 0.0
    $region21: #{tpu_custom_call.1} parent=1 // pred_fallthru
      _
    %v58 = vld [vmem:[#allocation5] sm:$0xff]
    %v59 = vld [vmem:[#allocation5 + $0x8] sm:$0xff]
    %v60 = vld [vmem:[#allocation7] sm:$0xff]
    %v61 = vld [vmem:[#allocation7 + $0x8] sm:$0xff]
    %v62 = vld [vmem:[#allocation2] sm:$0x3]
    %v63 = vmul.f32 %v58, %v60
    %v64 = vmul.f32 %v59, %v61
    %v67 = vcombine.high %v63, %v63
    %v69 = vunpack.c.l.s4 1983009808
    %v70 = vunpack.c.0.s8 %v69
    %v71 = vlaneseq
    %v72 = vshrl.u32 %v71, 7
    %v73 = vsub.s32 %v70, %v72
    %v74 = vrot.slane %v63, %v73
    %v76 = vunpack.c.l.s4 1983009808
    %v77 = vunpack.c.0.s8 %v76
    %v78 = vlaneseq
    %v79 = vshrl.u32 %v78, 7
    %v80 = vsub.s32 %v77, %v79
    %v81 = vrot.slane %v67, %v80
    %v82 = vcombine.high %v74, %v74
    %v83 = vcombine.high %v81, %v81
    %v84 = vcombine.high %v64, %v64
    %v86 = vunpack.c.l.s4 1983009808
    %v87 = vunpack.c.0.s8 %v86
    %v88 = vlaneseq
    %v89 = vshrl.u32 %v88, 7
    %v90 = vsub.s32 %v87, %v89
    %v91 = vrot.slane %v64, %v90
    %v93 = vunpack.c.l.s4 1983009808
    %v94 = vunpack.c.0.s8 %v93
    %v95 = vlaneseq
    %v96 = vshrl.u32 %v95, 7
    %v97 = vsub.s32 %v94, %v96
    %v98 = vrot.slane %v84, %v97
    %v99 = vcombine.high %v91, %v91
    %v100 = vcombine.high %v98, %v98
    %vm109 = vcmask 1041408
    %v110 = vsel %vm109, %v74, 0.0
    %v111 = vsel %vm109, %v82, 0.0
    %v112 = vadd.f32 %v110, %v111
    %v113 = vsel %vm109, %v81, 0.0
    %v114 = vadd.f32 %v112, %v113
    %v115 = vsel %vm109, %v83, 0.0
    %v116 = vadd.f32 %v114, %v115
    %v117 = vsel %vm109, %v91, 0.0
    %v118 = vadd.f32 %v116, %v117
    %v119 = vsel %vm109, %v99, 0.0
    %v120 = vadd.f32 %v118, %v119
    %v121 = vsel %vm109, %v98, 0.0
    %v122 = vadd.f32 %v120, %v121
    %v123 = vsel %vm109, %v100, 0.0
    %v124 = vadd.f32 %v122, %v123
    %125 = vadd.xlane.f32.xlu0 %v124
    %v126 = vpop.xlane.xlu0 %125
    %v127 = vadd.f32 %v62, %v126
    %vm128 = vcmask 1024
    %129 = vst.msk [vmem:[#allocation2] sm:$0x3] %vm128, %v127
    %v130 = vld [vmem:[#allocation3] sm:$0x3]
    %v131 = vmul.f32 %v58, %v58
    %v132 = vmul.f32 %v59, %v59
    %v135 = vcombine.high %v131, %v131
    %v137 = vunpack.c.l.s4 1983009808
    %v138 = vunpack.c.0.s8 %v137
    %v139 = vlaneseq
    %v140 = vshrl.u32 %v139, 7
    %v141 = vsub.s32 %v138, %v140
    %v142 = vrot.slane %v131, %v141
    %v144 = vunpack.c.l.s4 1983009808
    %v145 = vunpack.c.0.s8 %v144
    %v146 = vlaneseq
    %v147 = vshrl.u32 %v146, 7
    %v148 = vsub.s32 %v145, %v147
    %v149 = vrot.slane %v135, %v148
    %v150 = vcombine.high %v142, %v142
    %v151 = vcombine.high %v149, %v149
    %v152 = vcombine.high %v132, %v132
    %v154 = vunpack.c.l.s4 1983009808
    %v155 = vunpack.c.0.s8 %v154
    %v156 = vlaneseq
    %v157 = vshrl.u32 %v156, 7
    %v158 = vsub.s32 %v155, %v157
    %v159 = vrot.slane %v132, %v158
    %v161 = vunpack.c.l.s4 1983009808
    %v162 = vunpack.c.0.s8 %v161
    %v163 = vlaneseq
    %v164 = vshrl.u32 %v163, 7
    %v165 = vsub.s32 %v162, %v164
    %v166 = vrot.slane %v152, %v165
    %v167 = vcombine.high %v159, %v159
    %v168 = vcombine.high %v166, %v166
    %v177 = vsel %vm109, %v142, 0.0
    %v178 = vsel %vm109, %v150, 0.0
    %v179 = vadd.f32 %v177, %v178
    %v180 = vsel %vm109, %v149, 0.0
    %v181 = vadd.f32 %v179, %v180
    %v182 = vsel %vm109, %v151, 0.0
    %v183 = vadd.f32 %v181, %v182
    %v184 = vsel %vm109, %v159, 0.0
    %v185 = vadd.f32 %v183, %v184
    %v186 = vsel %vm109, %v167, 0.0
    %v187 = vadd.f32 %v185, %v186
    %v188 = vsel %vm109, %v166, 0.0
    %v189 = vadd.f32 %v187, %v188
    %v190 = vsel %vm109, %v168, 0.0
    %v191 = vadd.f32 %v189, %v190
    %192 = vadd.xlane.f32.xlu0 %v191
    %v193 = vpop.xlane.xlu0 %192
    %v194 = vadd.f32 %v130, %v193
    %195 = vst.msk [vmem:[#allocation3] sm:$0x3] %vm128, %v194
    %v196 = vld [vmem:[#allocation4] sm:$0x3]
    %v197 = vmul.f32 %v60, %v60
    %v198 = vmul.f32 %v61, %v61
    %v201 = vcombine.high %v197, %v197
    %v203 = vunpack.c.l.s4 1983009808
    %v204 = vunpack.c.0.s8 %v203
    %v205 = vlaneseq
    %v206 = vshrl.u32 %v205, 7
    %v207 = vsub.s32 %v204, %v206
    %v208 = vrot.slane %v197, %v207
    %v210 = vunpack.c.l.s4 1983009808
    %v211 = vunpack.c.0.s8 %v210
    %v212 = vlaneseq
    %v213 = vshrl.u32 %v212, 7
    %v214 = vsub.s32 %v211, %v213
    %v215 = vrot.slane %v201, %v214
    %v216 = vcombine.high %v208, %v208
    %v217 = vcombine.high %v215, %v215
    %v218 = vcombine.high %v198, %v198
    %v220 = vunpack.c.l.s4 1983009808
    %v221 = vunpack.c.0.s8 %v220
    %v222 = vlaneseq
    %v223 = vshrl.u32 %v222, 7
    %v224 = vsub.s32 %v221, %v223
    %v225 = vrot.slane %v198, %v224
    %v227 = vunpack.c.l.s4 1983009808
    %v228 = vunpack.c.0.s8 %v227
    %v229 = vlaneseq
    %v230 = vshrl.u32 %v229, 7
    %v231 = vsub.s32 %v228, %v230
    %v232 = vrot.slane %v218, %v231
    %v233 = vcombine.high %v225, %v225
    %v234 = vcombine.high %v232, %v232
    %v243 = vsel %vm109, %v208, 0.0
    %v244 = vsel %vm109, %v216, 0.0
    %v245 = vadd.f32 %v243, %v244
    %v246 = vsel %vm109, %v215, 0.0
    %v247 = vadd.f32 %v245, %v246
    %v248 = vsel %vm109, %v217, 0.0
    %v249 = vadd.f32 %v247, %v248
    %v250 = vsel %vm109, %v225, 0.0
    %v251 = vadd.f32 %v249, %v250
    %v252 = vsel %vm109, %v233, 0.0
    %v253 = vadd.f32 %v251, %v252
    %v254 = vsel %vm109, %v232, 0.0
    %v255 = vadd.f32 %v253, %v254
    %v256 = vsel %vm109, %v234, 0.0
    %v257 = vadd.f32 %v255, %v256
    %258 = vadd.xlane.f32.xlu0 %v257
    %v259 = vpop.xlane.xlu0 %258
    %v260 = vadd.f32 %v196, %v259
    %261 = vst.msk [vmem:[#allocation4] sm:$0x3] %vm128, %v260
    // Predicated region
    $region22: #{tpu_custom_call.1} parent=1 // pred_check
      %p262 = pneg %p50
    $region23: #{tpu_custom_call.1} parent=1 // pred_check_branch
      %264 = sbr.rel (%p262) target = $region25
    $region24: #{tpu_custom_call.1} parent=1 // pred_region
      %v265 = vld [vmem:[#allocation2] sm:$0x3]
      %266 = vst.msk [vmem:[%s2] sm:$0x3] %vm128, %v265
      %v267 = vld [vmem:[#allocation3] sm:$0x3]
      %268 = vst.msk [vmem:[%s3] sm:$0x3] %vm128, %v267
      %v269 = vld [vmem:[#allocation4] sm:$0x3]
      %270 = vst.msk [vmem:[%s4] sm:$0x3] %vm128, %v269
    $region25: #{tpu_custom_call.1} parent=1 // pred_fallthru
      _
    // Predicated region
    $region26: #{tpu_custom_call.1} parent=1 // pred_check
      _
    $region27: #{tpu_custom_call.1} parent=1 // pred_check_branch
      %272 = sbr.rel (0) target = $region29
    $region28: #{tpu_custom_call.1} parent=1 // pred_region
      _
    $region29: #{tpu_custom_call.1} parent=1 // pred_fallthru
      _
    // Predicated region
    $region30: #{tpu_custom_call.1} parent=1 // pred_check
      _
    $region31: #{tpu_custom_call.1} parent=1 // pred_check_branch
      %274 = sbr.rel (0) target = $region33
    $region32: #{tpu_custom_call.1} parent=1 // pred_region
      _
    $region33: #{tpu_custom_call.1} parent=1 // pred_fallthru
      _
    // Predicated region
    $region34: #{tpu_custom_call.1} parent=1 // pred_check
      _
    $region35: #{tpu_custom_call.1} parent=1 // pred_check_branch
      %276 = sbr.rel (0) target = $region37
    $region36: #{tpu_custom_call.1} parent=1 // pred_region
      _
    $region37: #{tpu_custom_call.1} parent=1 // pred_fallthru
      _
    // Predicated region
    $region38: #{tpu_custom_call.1} parent=1 // pred_check
      _
    $region39: #{tpu_custom_call.1} parent=1 // pred_check_branch
      %278 = sbr.rel (0) target = $region41
    $region40: #{tpu_custom_call.1} parent=1 // pred_region
      _
    $region41: #{tpu_custom_call.1} parent=1 // pred_fallthru
      _
    // Predicated region
    $region42: #{tpu_custom_call.1} parent=1 // pred_check
      _
    $region43: #{tpu_custom_call.1} parent=1 // pred_check_branch
      %280 = sbr.rel (0) target = $region45
    $region44: #{tpu_custom_call.1} parent=1 // pred_region
      _
    $region45: #{tpu_custom_call.1} parent=1 // pred_fallthru
      _
    // Predicated region
    $region46: #{tpu_custom_call.1} parent=1 // pred_check
      _
    $region47: #{tpu_custom_call.1} parent=1 // pred_check_branch
      %282 = sbr.rel (0) target = $region49
    $region48: #{tpu_custom_call.1} parent=1 // pred_region
      _
    $region49: #{tpu_custom_call.1} parent=1 // pred_fallthru
      _
    %283 = vsyncpa [#allocation6], 1
    %284 = vsyncpa [#allocation8], 1

</llo_original>
